<compile_context>
chip_gen: v7x
topology: tpu7x:2x2x1
jax: 0.10.0
libtpu: 0.0.40
codegen_flags: <defaults>
</compile_context>

<pallas_src>
import jax
import jax.numpy as jnp
from jax import lax
from jax.experimental import pallas as pl
from jax.experimental.pallas import tpu as pltpu


def _make_encoding_kernel(*, N, tn, tiles_per_split, C, K, needs_mask, logits_bf16):
    """Builds the kernel body with all shape/config constants baked in at trace time."""

    def kernel(x_ref, cw2_ref, cw_ref, scale_ref, bias_ref, out_ref, acc_ref, xaug_ref):
        # x_ref:     (C, tn)   channels on sublanes, pixels on lanes (native NCHW layout)
        # cw2_ref:   (K, C)    (-2 * scale) * codewords   (logits-matmul LHS)
        # cw_ref:    (K, C)    original codewords         (finalize only)
        # scale_ref: (K, 1)    per-codeword scale
        # bias_ref:  (K, 1)    scale * ||codeword||^2
        # out_ref:   (K, C)    encoded features for this (batch, split)
        # acc_ref:   (K, C+1)  f32 scratch: [ sum_n a*x  |  sum_n a ]
        # xaug_ref:  (C+1, tn) f32 scratch: x tile augmented with a ones row
        t = pl.program_id(2)

        @pl.when(t == 0)
        def _init():
            acc_ref[...] = jnp.zeros_like(acc_ref)

        x = x_ref[...]                                        # (C, tn)
        if needs_mask:
            gt = pl.program_id(1) * tiles_per_split + t       # unclamped global tile idx
            col = gt * tn + lax.broadcasted_iota(jnp.int32, (1, tn), 1)
            valid = col < N                                   # (1, tn)
            x = jnp.where(valid, x, 0.0)                      # scrub padded/garbage lanes

        scale = scale_ref[...]                                # (K, 1)
        bias = bias_ref[...]                                  # (K, 1)

        # scaled L2 logits, laid out (K, tn):
        #   sl2 = scale*||x||^2 + (-2*scale*cw) . x + scale*||cw||^2
        xx = jnp.sum(x * x, axis=0, keepdims=True)            # (1, tn)
        if logits_bf16:
            xc = lax.dot_general(cw2_ref[...].astype(jnp.bfloat16),
                                 x.astype(jnp.bfloat16),
                                 (((1,), (0,)), ((), ())),
                                 preferred_element_type=jnp.float32)   # (K, tn)
        else:
            xc = lax.dot_general(cw2_ref[...], x,
                                 (((1,), (0,)), ((), ())),
                                 preferred_element_type=jnp.float32)   # (K, tn)
        sl2 = xc + scale * xx + bias                          # (K, tn)

        # softmax over codewords (K axis); per-pixel, no online softmax needed
        m = jnp.max(sl2, axis=0, keepdims=True)               # (1, tn)
        e = jnp.exp(sl2 - m)                                  # (K, tn)
        denom = jnp.sum(e, axis=0, keepdims=True)             # (1, tn)
        a = e * pl.reciprocal(denom, approx=False)            # (K, tn)
        if needs_mask:
            a = jnp.where(valid, a, 0.0)                      # padded pixels contribute 0

        # Stage x with a ones row so ONE NT matmul yields both sum_n a*x and sum_n a.
        xaug_ref[0:C, :] = x
        xaug_ref[C:C + 1, :] = jnp.ones((1, tn), jnp.float32)
        acc_ref[...] += lax.dot_general(a, xaug_ref[...],
                                        (((1,), (1,)), ((), ())),
                                        preferred_element_type=jnp.float32)  # (K, C+1)

        @pl.when(t == tiles_per_split - 1)
        def _finalize():
            # Output store is K*C*4 = 8 KiB once per (batch, split); lane density of the
            # (K, C=32) store is immaterial at this frequency.
            acc = acc_ref[...]
            out_ref[...] = (acc[:, :C] - acc[:, C:C + 1] * cw_ref[...]).astype(out_ref.dtype)

    return kernel


def _pick_tile_n(N, max_tile=2048):
    """Single full-N tile if it fits, otherwise the largest multiple of 128 <= max_tile."""
    if N <= max_tile or N < 128:
        return N
    return max(128, (min(max_tile, N) // 128) * 128)


def encoding_forward(x_nchw, codewords, scale, *, max_tile_n=2048, n_splits=None,
                     logits_bf16=False):
    """x_nchw: (B, C, H, W) float32.  Returns encoded_feat (B, 64, C) float32."""
    B, C, H, W = x_nchw.shape
    K, C2 = codewords.shape
    assert C == C2
    N = H * W

    # Free collapse of trailing spatial dims -- NO host-side transpose of x.
    x_bcn = x_nchw.reshape(B, C, N)

    # Hoisted constant algebra (tiny, done once by XLA).
    scale_k1 = scale.reshape(K, 1).astype(jnp.float32)
    cw = codewords.astype(jnp.float32)
    cw2 = (-2.0 * scale_k1) * cw                                   # (K, C)
    bias = scale_k1 * jnp.sum(cw * cw, axis=1, keepdims=True)      # (K, 1)

    tn = _pick_tile_n(N, max_tile_n)
    num_tiles = pl.cdiv(N, tn)

    # Optional split of the N reduction across a parallel axis (both v7x TensorCores
    # busy when B == 1); harmless serial loop on single-TC chips.
    if n_splits is None:
        n_splits = 2 if B == 1 else 1
    n_splits = max(1, min(n_splits, num_tiles))
    tiles_per_split = pl.cdiv(num_tiles, n_splits)
    needs_clamp = tiles_per_split * n_splits != num_tiles
    needs_mask = (num_tiles * tn != N) or needs_clamp

    last_block = num_tiles - 1
    tps = tiles_per_split
    if needs_clamp:
        # Duplicated trailing tiles are clamped to a valid block (their columns are fully
        # masked in-kernel, so they contribute nothing).
        x_index = lambda b, s, t: (b, 0, jnp.minimum(s * tps + t, last_block))
    else:
        x_index = lambda b, s, t: (b, 0, s * tps + t)

    kernel = _make_encoding_kernel(N=N, tn=tn, tiles_per_split=tps, C=C, K=K,
                                   needs_mask=needs_mask, logits_bf16=logits_bf16)

    cost = pl.CostEstimate(
        flops=int(4 * B * N * K * (C + 1) + 8 * B * N * K),
        transcendentals=int(B * N * K),
        bytes_accessed=int(4 * (B * C * N + 2 * K * C + 2 * K + B * n_splits * K * C)),
    )

    out = pl.pallas_call(
        kernel,
        out_shape=jax.ShapeDtypeStruct((B * n_splits, K, C), jnp.float32),
        grid_spec=pltpu.PrefetchScalarGridSpec(
            num_scalar_prefetch=0,
            grid=(B, n_splits, tps),                          # reduction (N) axis last
            in_specs=[
                pl.BlockSpec((None, C, tn), x_index),                    # x tile (C, tn)
                pl.BlockSpec((K, C), lambda b, s, t: (0, 0)),            # cw2
                pl.BlockSpec((K, C), lambda b, s, t: (0, 0)),            # cw (finalize)
                pl.BlockSpec((K, 1), lambda b, s, t: (0, 0)),            # scale
                pl.BlockSpec((K, 1), lambda b, s, t: (0, 0)),            # bias
            ],
            out_specs=pl.BlockSpec((None, K, C), lambda b, s, t: (b * n_splits + s, 0, 0)),
            scratch_shapes=[
                pltpu.VMEM((K, C + 1), jnp.float32),          # [A X^T | asum] accumulator
                pltpu.VMEM((C + 1, tn), jnp.float32),         # x tile augmented with ones
            ],
        ),
        compiler_params=pltpu.CompilerParams(
            dimension_semantics=("parallel", "parallel", "arbitrary"),
            vmem_limit_bytes=32 * 1024 * 1024,                # safe on v7x's smaller VMEM
        ),
        cost_estimate=cost,
    )(x_bcn, cw2, cw, scale_k1, bias)

    # Sum the per-split partial accumulators (no-op copy when n_splits == 1).
    return jnp.sum(out.reshape(B, n_splits, K, C), axis=1)


def encoding_reference(x_nchw, codewords, scale):
    """Pure-JAX reference mirroring the torch Encoding.forward literally."""
    B, C, H, W = x_nchw.shape
    K, _ = codewords.shape
    x = jnp.transpose(x_nchw.reshape(B, C, H * W), (0, 2, 1))    # (B, N, C)
    diff = x[:, :, None, :] - codewords[None, None, :, :]        # (B, N, K, C)
    sl2 = scale[None, None, :] * jnp.sum(diff * diff, axis=3)    # (B, N, K)
    a = jax.nn.softmax(sl2, axis=2)                              # (B, N, K)
    enc = jnp.sum(a[..., None] * diff, axis=1)                   # (B, K, C)
    return enc


if __name__ == "__main__":
    in_channels = 32
    num_codes = 64   # torch __init__ hardcodes 64 for the parameter shapes

    key = jax.random.PRNGKey(0)
    kc, ks, k1, k2, k3 = jax.random.split(key, 5)

    std = 1.0 / (num_codes * in_channels) ** 0.5
    codewords = jax.random.uniform(kc, (num_codes, in_channels),
                                   minval=-std, maxval=std, dtype=jnp.float32)
    scale = jax.random.uniform(ks, (num_codes,),
                               minval=-1.0, maxval=0.0, dtype=jnp.float32)

    # Case 1: small map, single full-N tile, no masking.
    B, H, W = 2, 8, 8
    x = jax.random.normal(k1, (B, in_channels, H, W), dtype=jnp.float32)
    out = jax.block_until_ready(encoding_forward(x, codewords, scale))
    ref = encoding_reference(x, codewords, scale)
    assert out.shape == (B, num_codes, in_channels)
    assert jnp.allclose(out, ref, atol=1e-4, rtol=1e-4), "mismatch vs reference (case 1)"

    # Case 2: N not a multiple of the tile -> multi-tile accumulation + masked edge tile.
    H2, W2 = 12, 12   # N = 144, tn forced to 128 -> 2 tiles, last one partial
    x2 = jax.random.normal(k2, (B, in_channels, H2, W2), dtype=jnp.float32)
    out2 = jax.block_until_ready(encoding_forward(x2, codewords, scale, max_tile_n=128))
    ref2 = encoding_reference(x2, codewords, scale)
    assert out2.shape == (B, num_codes, in_channels)
    assert jnp.allclose(out2, ref2, atol=1e-4, rtol=1e-4), "mismatch vs reference (case 2)"

    # Case 3: B == 1 -> auto 2-way split of the N reduction (v7x two-TC path), with an odd
    # tile count so the clamped duplicated tile + full masking path is exercised.
    H3, W3 = 16, 17   # N = 272, tn = 128 -> 3 tiles, split into 2x2 with one clamped tile
    x3 = jax.random.normal(k3, (1, in_channels, H3, W3), dtype=jnp.float32)
    out3 = jax.block_until_ready(encoding_forward(x3, codewords, scale, max_tile_n=128))
    ref3 = encoding_reference(x3, codewords, scale)
    assert out3.shape == (1, num_codes, in_channels)
    assert jnp.allclose(out3, ref3, atol=1e-4, rtol=1e-4), "mismatch vs reference (case 3)"

    # Case 4: optional bf16 logits matmul (gated flag) -- looser tolerance by design.
    out4 = jax.block_until_ready(encoding_forward(x, codewords, scale, logits_bf16=True))
    assert out4.shape == (B, num_codes, in_channels)
    assert jnp.allclose(out4, ref, atol=2e-2, rtol=2e-2), "mismatch vs reference (case 4, bf16)"

    print("KERNEL_OK")
</pallas_src>

<mosaic_0001>
module attributes {stable_mosaic.version = 11 : i64} {
  func.func @kernel(%arg0: i32, %arg1: i32, %arg2: i32, %arg3: memref<1x32x64xf32, #tpu.memory_space<vmem>>, %arg4: memref<64x32xf32, #tpu.memory_space<vmem>>, %arg5: memref<64x32xf32, #tpu.memory_space<vmem>>, %arg6: memref<64x1xf32, #tpu.memory_space<vmem>>, %arg7: memref<64x1xf32, #tpu.memory_space<vmem>>, %arg8: memref<1x64x32xf32, #tpu.memory_space<vmem>>, %arg9: memref<64x33xf32, #tpu.memory_space<vmem>>, %arg10: memref<33x64xf32, #tpu.memory_space<vmem>>) attributes {dimension_semantics = [#tpu.dimension_semantics<parallel>, #tpu.dimension_semantics<parallel>, #tpu.dimension_semantics<arbitrary>], iteration_bounds = array<i64: 2, 1, 1>, scalar_prefetch = 0 : i64, scratch_operands = 2 : i64, tpu.core_type = #tpu.core_type<tc>, window_params = [{transform_indices = @transform_0, window_bounds = array<i64: 1, 32, 64>}, {pipeline_mode = #tpu.pipeline_mode<synchronous>, transform_indices = @transform_1, window_bounds = array<i64: 64, 32>}, {pipeline_mode = #tpu.pipeline_mode<synchronous>, transform_indices = @transform_2, window_bounds = array<i64: 64, 32>}, {pipeline_mode = #tpu.pipeline_mode<synchronous>, transform_indices = @transform_3, window_bounds = array<i64: 64, 1>}, {pipeline_mode = #tpu.pipeline_mode<synchronous>, transform_indices = @transform_4, window_bounds = array<i64: 64, 1>}, {transform_indices = @transform_5, window_bounds = array<i64: 1, 64, 32>}]} {
    %c0_i32 = arith.constant 0 : i32
    %0 = arith.cmpi eq, %arg2, %c0_i32 : i32
    %1 = arith.extui %0 : i1 to i32
    %c0_i32_0 = arith.constant 0 : i32
    %2 = arith.cmpi ne, %1, %c0_i32_0 : i32
    scf.if %2 {
      %cst_25 = arith.constant 0.000000e+00 : f32
      %39 = vector.broadcast %cst_25 : f32 to vector<64x33xf32>
      %c0_26 = arith.constant 0 : index
      %c0_27 = arith.constant 0 : index
      %40 = vector.load %arg9[%c0_26, %c0_27] : memref<64x33xf32, #tpu.memory_space<vmem>>, vector<64x33xf32>
      tpu.vector_store %arg9[%c0_26, %c0_27], %39 {strides = array<i32>} : memref<64x33xf32, #tpu.memory_space<vmem>>, vector<64x33xf32>,
    } else {
    }
    %c0 = arith.constant 0 : index
    %c0_1 = arith.constant 0 : index
    %c0_2 = arith.constant 0 : index
    %3 = vector.load %arg3[%c0, %c0_1, %c0_2] : memref<1x32x64xf32, #tpu.memory_space<vmem>>, vector<1x32x64xf32>
    %4 = vector.shape_cast %3 : vector<1x32x64xf32> to vector<32x64xf32>
    %c0_3 = arith.constant 0 : index
    %c0_4 = arith.constant 0 : index
    %5 = vector.load %arg6[%c0_3, %c0_4] : memref<64x1xf32, #tpu.memory_space<vmem>>, vector<64x1xf32>
    %c0_5 = arith.constant 0 : index
    %c0_6 = arith.constant 0 : index
    %6 = vector.load %arg7[%c0_5, %c0_6] : memref<64x1xf32, #tpu.memory_space<vmem>>, vector<64x1xf32>
    %7 = arith.mulf %4, %4 : vector<32x64xf32>
    %cst = arith.constant dense<0.000000e+00> : vector<64xf32>
    %8 = vector.multi_reduction <add>, %7, %cst [0] : vector<32x64xf32> to vector<64xf32>
    %9 = vector.shape_cast %8 : vector<64xf32> to vector<1x64xf32>
    %c0_7 = arith.constant 0 : index
    %c0_8 = arith.constant 0 : index
    %10 = vector.load %arg4[%c0_7, %c0_8] : memref<64x32xf32, #tpu.memory_space<vmem>>, vector<64x32xf32>
    %cst_9 = arith.constant dense<0.000000e+00> : vector<64x64xf32>
    %11 = tpu.matmul %10, %4, %cst_9 {dimension_numbers = #tpu.dot_dimension_numbers<[1], [0], [0], [1], [0, 0, 1, 1], [], []>} : vector<64x32xf32>, vector<32x64xf32>, vector<64x64xf32> -> vector<64x64xf32>
    %12 = vector.broadcast %5 : vector<64x1xf32> to vector<64x64xf32>
    %13 = vector.broadcast %9 : vector<1x64xf32> to vector<64x64xf32>
    %14 = arith.mulf %12, %13 : vector<64x64xf32>
    %15 = arith.addf %11, %14 : vector<64x64xf32>
    %16 = vector.broadcast %6 : vector<64x1xf32> to vector<64x64xf32>
    %17 = arith.addf %15, %16 : vector<64x64xf32>
    %cst_10 = arith.constant dense<0xFF800000> : vector<64xf32>
    %18 = vector.multi_reduction <maximumf>, %17, %cst_10 [0] : vector<64x64xf32> to vector<64xf32>
    %19 = vector.shape_cast %18 : vector<64xf32> to vector<1x64xf32>
    %20 = vector.broadcast %19 : vector<1x64xf32> to vector<64x64xf32>
    %21 = arith.subf %17, %20 : vector<64x64xf32>
    %22 = math.exp %21 : vector<64x64xf32>
    %cst_11 = arith.constant dense<0.000000e+00> : vector<64xf32>
    %23 = vector.multi_reduction <add>, %22, %cst_11 [0] : vector<64x64xf32> to vector<64xf32>
    %24 = vector.shape_cast %23 : vector<64xf32> to vector<1x64xf32>
    %25 = tpu.reciprocal %24 : vector<1x64xf32> -> vector<1x64xf32>
    %26 = vector.broadcast %25 : vector<1x64xf32> to vector<64x64xf32>
    %27 = arith.mulf %22, %26 : vector<64x64xf32>
    %c0_12 = arith.constant 0 : index
    %c0_13 = arith.constant 0 : index
    %28 = vector.load %arg10[%c0_12, %c0_13] : memref<33x64xf32, #tpu.memory_space<vmem>>, vector<32x64xf32>
    tpu.vector_store %arg10[%c0_12, %c0_13], %4 {strides = array<i32>} : memref<33x64xf32, #tpu.memory_space<vmem>>, vector<32x64xf32>,
    %cst_14 = arith.constant 1.000000e+00 : f32
    %29 = vector.broadcast %cst_14 : f32 to vector<1x64xf32>
    %c32 = arith.constant 32 : index
    %c0_15 = arith.constant 0 : index
    %30 = vector.load %arg10[%c32, %c0_15] : memref<33x64xf32, #tpu.memory_space<vmem>>, vector<1x64xf32>
    tpu.vector_store %arg10[%c32, %c0_15], %29 {strides = array<i32>} : memref<33x64xf32, #tpu.memory_space<vmem>>, vector<1x64xf32>,
    %c0_16 = arith.constant 0 : index
    %c0_17 = arith.constant 0 : index
    %31 = vector.load %arg9[%c0_16, %c0_17] : memref<64x33xf32, #tpu.memory_space<vmem>>, vector<64x33xf32>
    %c0_18 = arith.constant 0 : index
    %c0_19 = arith.constant 0 : index
    %32 = vector.load %arg10[%c0_18, %c0_19] : memref<33x64xf32, #tpu.memory_space<vmem>>, vector<33x64xf32>
    %cst_20 = arith.constant dense<0.000000e+00> : vector<64x33xf32>
    %33 = tpu.matmul %27, %32, %cst_20 {dimension_numbers = #tpu.dot_dimension_numbers<[1], [1], [0], [0], [0, 0, 1, 0], [], []>} : vector<64x64xf32>, vector<33x64xf32>, vector<64x33xf32> -> vector<64x33xf32>
    %34 = arith.addf %31, %33 : vector<64x33xf32>
    %c0_21 = arith.constant 0 : index
    %c0_22 = arith.constant 0 : index
    %35 = vector.load %arg9[%c0_21, %c0_22] : memref<64x33xf32, #tpu.memory_space<vmem>>, vector<64x33xf32>
    tpu.vector_store %arg9[%c0_21, %c0_22], %34 {strides = array<i32>} : memref<64x33xf32, #tpu.memory_space<vmem>>, vector<64x33xf32>,
    %c0_i32_23 = arith.constant 0 : i32
    %36 = arith.cmpi eq, %arg2, %c0_i32_23 : i32
    %37 = arith.extui %36 : i1 to i32
    %c0_i32_24 = arith.constant 0 : i32
    %38 = arith.cmpi ne, %37, %c0_i32_24 : i32
    scf.if %38 {
      %c0_25 = arith.constant 0 : index
      %c0_26 = arith.constant 0 : index
      %39 = vector.load %arg9[%c0_25, %c0_26] : memref<64x33xf32, #tpu.memory_space<vmem>>, vector<64x33xf32>
      %40 = vector.extract_strided_slice %39 {offsets = [0, 0], sizes = [64, 32], strides = [1, 1]} : vector<64x33xf32> to vector<64x32xf32>
      %41 = vector.extract_strided_slice %39 {offsets = [0, 32], sizes = [64, 1], strides = [1, 1]} : vector<64x33xf32> to vector<64x1xf32>
      %c0_27 = arith.constant 0 : index
      %c0_28 = arith.constant 0 : index
      %42 = vector.load %arg5[%c0_27, %c0_28] : memref<64x32xf32, #tpu.memory_space<vmem>>, vector<64x32xf32>
      %43 = vector.broadcast %41 : vector<64x1xf32> to vector<64x32xf32>
      %44 = arith.mulf %43, %42 : vector<64x32xf32>
      %45 = arith.subf %40, %44 : vector<64x32xf32>
      %c0_29 = arith.constant 0 : index
      %c0_30 = arith.constant 0 : index
      %c0_31 = arith.constant 0 : index
      %46 = vector.load %arg8[%c0_29, %c0_30, %c0_31] : memref<1x64x32xf32, #tpu.memory_space<vmem>>, vector<1x64x32xf32>
      %47 = vector.shape_cast %46 : vector<1x64x32xf32> to vector<64x32xf32>
      %48 = vector.shape_cast %45 : vector<64x32xf32> to vector<1x64x32xf32>
      tpu.vector_store %arg8[%c0_29, %c0_30, %c0_31], %48 {strides = array<i32>} : memref<1x64x32xf32, #tpu.memory_space<vmem>>, vector<1x64x32xf32>,
    } else {
    }
    return
  }
  func.func @transform_0(%arg0: i32, %arg1: i32, %arg2: i32) -> (i32, i32, i32) {
    %c1_i32 = arith.constant 1 : i32
    %0 = arith.muli %arg1, %c1_i32 : i32
    %1 = arith.addi %0, %arg2 : i32
    %c0_i32 = arith.constant 0 : i32
    %c0_i32_0 = arith.constant 0 : i32
    return %arg0, %c0_i32, %1 : i32, i32, i32
  }
  func.func @transform_1(%arg0: i32, %arg1: i32, %arg2: i32) -> (i32, i32) {
    %c0_i32 = arith.constant 0 : i32
    %c0_i32_0 = arith.constant 0 : i32
    %c0_i32_1 = arith.constant 0 : i32
    return %c0_i32, %c0_i32_0 : i32, i32
  }
  func.func @transform_2(%arg0: i32, %arg1: i32, %arg2: i32) -> (i32, i32) {
    %c0_i32 = arith.constant 0 : i32
    %c0_i32_0 = arith.constant 0 : i32
    %c0_i32_1 = arith.constant 0 : i32
    return %c0_i32, %c0_i32_0 : i32, i32
  }
  func.func @transform_3(%arg0: i32, %arg1: i32, %arg2: i32) -> (i32, i32) {
    %c0_i32 = arith.constant 0 : i32
    %c0_i32_0 = arith.constant 0 : i32
    %c0_i32_1 = arith.constant 0 : i32
    return %c0_i32, %c0_i32_0 : i32, i32
  }
  func.func @transform_4(%arg0: i32, %arg1: i32, %arg2: i32) -> (i32, i32) {
    %c0_i32 = arith.constant 0 : i32
    %c0_i32_0 = arith.constant 0 : i32
    %c0_i32_1 = arith.constant 0 : i32
    return %c0_i32, %c0_i32_0 : i32, i32
  }
  func.func @transform_5(%arg0: i32, %arg1: i32, %arg2: i32) -> (i32, i32, i32) {
    %c1_i32 = arith.constant 1 : i32
    %0 = arith.muli %arg0, %c1_i32 : i32
    %1 = arith.addi %0, %arg1 : i32
    %c0_i32 = arith.constant 0 : i32
    %c0_i32_0 = arith.constant 0 : i32
    %c0_i32_1 = arith.constant 0 : i32
    return %1, %c0_i32, %c0_i32_0 : i32, i32, i32
  }
}

</mosaic_0001>

<llo_original>
// kernel: tpu_custom_call.1
$region0: #{tpu_custom_call.1}
  #allocation0 [shape = 'u32[]', space=smem, size = 0x4, offset = 0x4, fixed_abs, tag = 'smem constant byte address 0x4 - core index']
  #allocation1 [shape = 'u32[144,128]{1,0:T(1,128)}', space=vmem, size = 0x12000, scoped, tag = 'internal scratch']
  #allocation2 [shape = 'f32[64,33]{1,0:T(8,128)}', space=vmem, size = 0x8000, scoped, tag = 'scratch operand']
  #allocation3 [shape = 'f32[33,64]{1,0:T(8,128)}', space=vmem, size = 0x5000, scoped, tag = 'scratch operand']
  %s0 = inlined_call_operand.vmem [shape: f32[2,32,64], index: 0, kind: input, shape index: {}]
  %s1 = inlined_call_operand.vmem [shape: f32[64,32], index: 1, kind: input, shape index: {}]
  %s2 = inlined_call_operand.vmem [shape: f32[64,32], index: 2, kind: input, shape index: {}]
  %s3 = inlined_call_operand.vmem [shape: f32[64,1], index: 3, kind: input, shape index: {}]
  %s4 = inlined_call_operand.vmem [shape: f32[64,1], index: 4, kind: input, shape index: {}]
  %s5 = inlined_call_operand.vmem [shape: f32[2,64,32], index: 5, kind: output, shape index: {}]
  %s6 = sld [smem:[#allocation0]]
  $region61: #{tpu_custom_call.1} parent=0
    _
  %s8 = ssub.s32 1, %s6
  %s9 = scalar_select 0, %s8, %s6
  loop: start=0, step=1, limit=4
  $region2: #{tpu_custom_call.1} parent=0 // loop_pre_header
    _
  $region3: #{tpu_custom_call.1} parent=0 // loop_header
    %s11 = sphi 0, %s15
    %p12 = scmp.ge.s32.totalorder %s11, 4
    %s18 = sphi 0, %s37
    %s19 = sphi 0, %s33
    %s20 = sphi 0, %s29
    %s21 = sphi 0, %s18
    %s22 = sphi 0, %s19
    %s23 = sphi 0, %s20
    %s24 = sphi 0, %s21
    %s25 = sphi 0, %s22
    %s26 = sphi 0, %s23
    %s44 = sphi 0, %s46
    %s47 = sphi 0, %s44
    %s48 = sphi 0, %s47
    %s64 = sphi 0, %s48
    %s68 = sphi 0, %s68
    %s70 = sphi 0, %s68
    %s71 = sphi 0, %s70
    %s85 = sphi 0, %s71
    %s89 = sphi 0, %s89
    %s91 = sphi 0, %s89
    %s92 = sphi 0, %s91
    %s106 = sphi 0, %s92
    %s110 = sphi 0, %s110
    %s112 = sphi 0, %s110
    %s113 = sphi 0, %s112
    %s127 = sphi 0, %s113
    %s131 = sphi 0, %s131
    %s133 = sphi 0, %s131
    %s134 = sphi 0, %s133
    %s148 = sphi 0, %s134
    %s156 = sphi 0, %s158
    %s159 = sphi 0, %s156
    %s160 = sphi 0, %s159
    %s176 = sphi 0, %s160
  $region4: #{tpu_custom_call.1} parent=0 // loop_header_branch
    %14 = sbr.rel (%p12) target = $region8
  $region5: #{tpu_custom_call.1} parent=0 // loop_body
    %s16 = ssub.s32 %s11, 1
    %s17 = ssub.s32 %s11, 2
    %s27 = sadd.s32 1, %s20
    %p28 = scmp.ge.s32.totalorder %s27, 1
    %s29 = scalar_select %p28, 0, %s27
    %s30 = sadd.s32 1, %s19
    %s31 = scalar_select %p28, %s30, %s19
    %p32 = scmp.ge.s32.totalorder %s31, 1
    %s33 = scalar_select %p32, 0, %s31
    %s34 = sadd.s32 1, %s18
    %s35 = scalar_select %p32, %s34, %s18
    %p36 = scmp.ge.s32.totalorder %s35, 2
    %s37 = scalar_select %p36, 0, %s35
    %s38 = sadd.s32 %s19, %s20
    %s39 = sadd.s32 %s33, %s29
    %s40 = ssub.s32 %s18, %s37
    %s41 = ssub.s32 %s38, %s39
    %s42 = sor.u32 %s40, %s41
    %p43 = scmp.eq.s32.totalorder %s42, 0
    %s45 = sadd.s32 %s44, 1
    %s46 = scalar_select %p43, %s44, %s45
    %p49 = pneg %p43
    %p50 = scmp.eq.s32.totalorder %s11, 1
    %p51 = por %p49, %p50
    %p52 = scmp.ne.s32.totalorder %s44, %s47
    %p53 = scmp.eq.s32.totalorder %s11, 0
    %p54 = por %p52, %p53
    %p55 = scmp.ne.s32.totalorder %s44, %s47
    %p56 = scmp.eq.s32.totalorder %s16, 1
    %p57 = por %p55, %p56
    %p58 = scmp.ne.s32.totalorder %s47, %s48
    %p59 = scmp.eq.s32.totalorder %s16, 0
    %p60 = por %p58, %p59
    %p61 = scmp.ne.s32.totalorder %s47, %s48
    %p62 = scmp.eq.s32.totalorder %s17, 1
    %p63 = por %p61, %p62
    %p65 = scmp.ne.s32.totalorder %s48, %s64
    %p66 = scmp.eq.s32.totalorder %s17, 0
    %p67 = por %p65, %p66
    %s69 = sadd.s32 %s68, 1
    %p72 = scmp.eq.s32.totalorder %s11, 1
    %p73 = scmp.ne.s32.totalorder %s68, %s70
    %p74 = scmp.eq.s32.totalorder %s11, 0
    %p75 = por %p73, %p74
    %p76 = scmp.ne.s32.totalorder %s68, %s70
    %p77 = scmp.eq.s32.totalorder %s16, 1
    %p78 = por %p76, %p77
    %p79 = scmp.ne.s32.totalorder %s70, %s71
    %p80 = scmp.eq.s32.totalorder %s16, 0
    %p81 = por %p79, %p80
    %p82 = scmp.ne.s32.totalorder %s70, %s71
    %p83 = scmp.eq.s32.totalorder %s17, 1
    %p84 = por %p82, %p83
    %p86 = scmp.ne.s32.totalorder %s71, %s85
    %p87 = scmp.eq.s32.totalorder %s17, 0
    %p88 = por %p86, %p87
    %s90 = sadd.s32 %s89, 1
    %p93 = scmp.eq.s32.totalorder %s11, 1
    %p94 = scmp.ne.s32.totalorder %s89, %s91
    %p95 = scmp.eq.s32.totalorder %s11, 0
    %p96 = por %p94, %p95
    %p97 = scmp.ne.s32.totalorder %s89, %s91
    %p98 = scmp.eq.s32.totalorder %s16, 1
    %p99 = por %p97, %p98
    %p100 = scmp.ne.s32.totalorder %s91, %s92
    %p101 = scmp.eq.s32.totalorder %s16, 0
    %p102 = por %p100, %p101
    %p103 = scmp.ne.s32.totalorder %s91, %s92
    %p104 = scmp.eq.s32.totalorder %s17, 1
    %p105 = por %p103, %p104
    %p107 = scmp.ne.s32.totalorder %s92, %s106
    %p108 = scmp.eq.s32.totalorder %s17, 0
    %p109 = por %p107, %p108
    %s111 = sadd.s32 %s110, 1
    %p114 = scmp.eq.s32.totalorder %s11, 1
    %p115 = scmp.ne.s32.totalorder %s110, %s112
    %p116 = scmp.eq.s32.totalorder %s11, 0
    %p117 = por %p115, %p116
    %p118 = scmp.ne.s32.totalorder %s110, %s112
    %p119 = scmp.eq.s32.totalorder %s16, 1
    %p120 = por %p118, %p119
    %p121 = scmp.ne.s32.totalorder %s112, %s113
    %p122 = scmp.eq.s32.totalorder %s16, 0
    %p123 = por %p121, %p122
    %p124 = scmp.ne.s32.totalorder %s112, %s113
    %p125 = scmp.eq.s32.totalorder %s17, 1
    %p126 = por %p124, %p125
    %p128 = scmp.ne.s32.totalorder %s113, %s127
    %p129 = scmp.eq.s32.totalorder %s17, 0
    %p130 = por %p128, %p129
    %s132 = sadd.s32 %s131, 1
    %p135 = scmp.eq.s32.totalorder %s11, 1
    %p136 = scmp.ne.s32.totalorder %s131, %s133
    %p137 = scmp.eq.s32.totalorder %s11, 0
    %p138 = por %p136, %p137
    %p139 = scmp.ne.s32.totalorder %s131, %s133
    %p140 = scmp.eq.s32.totalorder %s16, 1
    %p141 = por %p139, %p140
    %p142 = scmp.ne.s32.totalorder %s133, %s134
    %p143 = scmp.eq.s32.totalorder %s16, 0
    %p144 = por %p142, %p143
    %p145 = scmp.ne.s32.totalorder %s133, %s134
    %p146 = scmp.eq.s32.totalorder %s17, 1
    %p147 = por %p145, %p146
    %p149 = scmp.ne.s32.totalorder %s134, %s148
    %p150 = scmp.eq.s32.totalorder %s17, 0
    %p151 = por %p149, %p150
    %s152 = sadd.s32 %s18, %s19
    %s153 = sadd.s32 %s37, %s33
    %s154 = ssub.s32 %s152, %s153
    %p155 = scmp.eq.s32.totalorder %s154, 0
    %s157 = sadd.s32 %s156, 1
    %s158 = scalar_select %p155, %s156, %s157
    %p161 = pneg %p155
    %p162 = scmp.eq.s32.totalorder %s11, 1
    %p163 = por %p161, %p162
    %p164 = scmp.ne.s32.totalorder %s156, %s159
    %p165 = scmp.eq.s32.totalorder %s11, 0
    %p166 = por %p164, %p165
    %p167 = scmp.ne.s32.totalorder %s156, %s159
    %p168 = scmp.eq.s32.totalorder %s16, 1
    %p169 = por %p167, %p168
    %p170 = scmp.ne.s32.totalorder %s159, %s160
    %p171 = scmp.eq.s32.totalorder %s16, 0
    %p172 = por %p170, %p171
    %p173 = scmp.ne.s32.totalorder %s159, %s160
    %p174 = scmp.eq.s32.totalorder %s17, 1
    %p175 = por %p173, %p174
    %p177 = scmp.ne.s32.totalorder %s160, %s176
    %p178 = scmp.eq.s32.totalorder %s17, 0
    %p179 = por %p177, %p178
    %p180 = scmp.le.s32.totalorder 1, %s11
    %p181 = scmp.lt.s32.totalorder %s11, 3
    %p182 = pnand %p180, %p181
    %p183 = pneg %p182
    // Predicated region
    $region9: #{tpu_custom_call.1} parent=5 // pred_check
      _
    $region10: #{tpu_custom_call.1} parent=5 // pred_check_branch
      %185 = sbr.rel (%p182) target = $region12
    $region11: #{tpu_custom_call.1} parent=5 // pred_region
      %s186 = ssub.s32 %s11, 1
      // Predicated region
      $region13: #{tpu_custom_call.1} parent=11 // pred_check
        %p187 = pneg %p81
      $region14: #{tpu_custom_call.1} parent=11 // pred_check_branch
        %189 = sbr.rel (%p187) target = $region16
      $region15: #{tpu_custom_call.1} parent=11 // pred_region
        _
      $region16: #{tpu_custom_call.1} parent=11 // pred_fallthru
        _
      // Predicated region
      $region17: #{tpu_custom_call.1} parent=11 // pred_check
        %p190 = pneg %p102
      $region18: #{tpu_custom_call.1} parent=11 // pred_check_branch
        %192 = sbr.rel (%p190) target = $region20
      $region19: #{tpu_custom_call.1} parent=11 // pred_region
        _
      $region20: #{tpu_custom_call.1} parent=11 // pred_fallthru
        _
      // Predicated region
      $region21: #{tpu_custom_call.1} parent=11 // pred_check
        %p193 = pneg %p123
      $region22: #{tpu_custom_call.1} parent=11 // pred_check_branch
        %195 = sbr.rel (%p193) target = $region24
      $region23: #{tpu_custom_call.1} parent=11 // pred_region
        _
      $region24: #{tpu_custom_call.1} parent=11 // pred_fallthru
        _
      // Predicated region
      $region25: #{tpu_custom_call.1} parent=11 // pred_check
        %p196 = pneg %p144
      $region26: #{tpu_custom_call.1} parent=11 // pred_check_branch
        %198 = sbr.rel (%p196) target = $region28
      $region27: #{tpu_custom_call.1} parent=11 // pred_region
        _
      $region28: #{tpu_custom_call.1} parent=11 // pred_fallthru
        _
    $region12: #{tpu_custom_call.1} parent=5 // pred_fallthru
      _
    %p199 = scmp.lt.s32.totalorder %s11, 2
    // Predicated region
    $region29: #{tpu_custom_call.1} parent=5 // pred_check
      %p200 = pneg %p199
    $region30: #{tpu_custom_call.1} parent=5 // pred_check_branch
      %202 = sbr.rel (%p200) target = $region32
    $region31: #{tpu_custom_call.1} parent=5 // pred_region
      // Predicated region
      $region33: #{tpu_custom_call.1} parent=31 // pred_check
        %p203 = pneg %p54
      $region34: #{tpu_custom_call.1} parent=31 // pred_check_branch
        %205 = sbr.rel (%p203) target = $region36
      $region35: #{tpu_custom_call.1} parent=31 // pred_region
        %s206 = sadd.s32 %s19, %s20
        %p207 = scmp.lt.s32.totalorder %s18, 1
        %s208 = scalar_select %p207, %s18, 1
        %p209 = scmp.lt.s32.totalorder %s206, 0
        %s210 = scalar_select %p209, %s206, 0
        %s211 = smul.addr %s208, 4
        %s212 = sadd.s32 %s210, %s211
        %s213 = smul.addr %s212, 8
        %s214 = scalar_lea.vmem %s0, %s213
        %s215 = sadd.s32 %s19, %s20
      $region36: #{tpu_custom_call.1} parent=31 // pred_fallthru
        _
    $region32: #{tpu_custom_call.1} parent=5 // pred_fallthru
      _
    %p216 = scmp.le.s32.totalorder 1, %s11
    %p217 = scmp.lt.s32.totalorder %s11, 3
    %p218 = pnand %p216, %p217
    %p219 = pneg %p218
    // Predicated region
    $region37: #{tpu_custom_call.1} parent=5 // pred_check
      _
    $region38: #{tpu_custom_call.1} parent=5 // pred_check_branch
      %221 = sbr.rel (%p218) target = $region40
    $region39: #{tpu_custom_call.1} parent=5 // pred_region
      %s222 = ssub.s32 %s11, 1
      %s223 = sadd.s32 %s22, %s23
      %p224 = scmp.lt.s32.totalorder %s21, 1
      %s225 = scalar_select %p224, %s21, 1
      %p226 = scmp.lt.s32.totalorder %s223, 0
      %s227 = scalar_select %p226, %s223, 0
      %s228 = smul.addr %s225, 4
      %s229 = sadd.s32 %s227, %s228
      %s230 = smul.addr %s229, 8
      %s231 = scalar_lea.vmem %s0, %s230
      %p232 = pneg %p60
      %p233 = pneg %p57
      %p234 = pneg %p81
      %p235 = pneg %p78
      %p236 = pneg %p102
      %p237 = pneg %p99
      %p238 = pneg %p123
      %p239 = pneg %p120
      %p240 = pneg %p144
      %p241 = pneg %p141
      %p242 = pneg %p172
      %p243 = pneg %p169
      %s244 = sadd.s32 %s21, %s22
      %p245 = scmp.lt.s32.totalorder %s244, 1
      %s246 = scalar_select %p245, %s244, 1
      %s247 = smul.addr %s246, 8
      %s248 = smul.addr %s247, 8
      %s249 = scalar_lea.vmem %s5, %s248
      %s250 = sadd.s32 %s22, %s23
      %p251 = scmp.lt.s32.totalorder %s21, 1
      %s252 = scalar_select %p251, %s21, 1
      %p253 = scmp.lt.s32.totalorder %s250, 0
      %s254 = scalar_select %p253, %s250, 0
      %s255 = smul.addr %s252, 4
      %s256 = sadd.s32 %s254, %s255
      %s257 = smul.addr %s256, 8
      %s258 = scalar_lea.vmem %s0, %s257
      %s259 = sadd.s32 %s22, %s23
      %s260 = sadd.s32 %s21, %s22
      %p261 = scmp.lt.s32.totalorder %s260, 1
      %s262 = scalar_select %p261, %s260, 1
      %s263 = smul.addr %s262, 8
      %s264 = smul.addr %s263, 8
      %s265 = scalar_lea.vmem %s5, %s264
      %s266 = sadd.s32 %s21, %s22
      %p267 = scmp.eq.s32.totalorder %s23, 0
      // Predicated region
      $region41: #{tpu_custom_call.1} parent=39 // pred_check
        %p268 = pneg %p267
      $region42: #{tpu_custom_call.1} parent=39 // pred_check_branch
        %270 = sbr.rel (%p268) target = $region44
      $region43: #{tpu_custom_call.1} parent=39 // pred_region
        %vm271 = vcmask 269312
        %272 = vst.msk [vmem:[#allocation2] sm:$0xff] %vm271, 0.0
        %273 = vst.msk [vmem:[#allocation2 + $0x8] sm:$0xff] %vm271, 0.0
        %274 = vst.msk [vmem:[#allocation2 + $0x10] sm:$0xff] %vm271, 0.0
        %275 = vst.msk [vmem:[#allocation2 + $0x18] sm:$0xff] %vm271, 0.0
        %276 = vst.msk [vmem:[#allocation2 + $0x20] sm:$0xff] %vm271, 0.0
        %277 = vst.msk [vmem:[#allocation2 + $0x28] sm:$0xff] %vm271, 0.0
        %278 = vst.msk [vmem:[#allocation2 + $0x30] sm:$0xff] %vm271, 0.0
        %279 = vst.msk [vmem:[#allocation2 + $0x38] sm:$0xff] %vm271, 0.0
      $region44: #{tpu_custom_call.1} parent=39 // pred_fallthru
        _
      %v280 = vld [vmem:[%s258] sm:$0xff]
      %v281 = vld [vmem:[%s258 + $0x8] sm:$0xff]
      %v282 = vld [vmem:[%s258 + $0x10] sm:$0xff]
      %v283 = vld [vmem:[%s258 + $0x18] sm:$0xff]
      %v284 = vld [vmem:[%s3] sm:$0xff]
      %v285 = vld [vmem:[%s3 + $0x8] sm:$0xff]
      %v286 = vld [vmem:[%s3 + $0x10] sm:$0xff]
      %v287 = vld [vmem:[%s3 + $0x18] sm:$0xff]
      %v288 = vld [vmem:[%s3 + $0x20] sm:$0xff]
      %v289 = vld [vmem:[%s3 + $0x28] sm:$0xff]
      %v290 = vld [vmem:[%s3 + $0x30] sm:$0xff]
      %v291 = vld [vmem:[%s3 + $0x38] sm:$0xff]
      %v292 = vld [vmem:[%s4] sm:$0xff]
      %v293 = vld [vmem:[%s4 + $0x8] sm:$0xff]
      %v294 = vld [vmem:[%s4 + $0x10] sm:$0xff]
      %v295 = vld [vmem:[%s4 + $0x18] sm:$0xff]
      %v296 = vld [vmem:[%s4 + $0x20] sm:$0xff]
      %v297 = vld [vmem:[%s4 + $0x28] sm:$0xff]
      %v298 = vld [vmem:[%s4 + $0x30] sm:$0xff]
      %v299 = vld [vmem:[%s4 + $0x38] sm:$0xff]
      %v300 = vmul.f32 %v280, %v280
      %v301 = vmul.f32 %v281, %v281
      %v302 = vmul.f32 %v282, %v282
      %v303 = vmul.f32 %v283, %v283
      %vm304 = vcmask 523264
      %v305 = vsel %vm304, %v300, 0.0
      %v306 = vsel %vm304, %v301, 0.0
      %v307 = vadd.f32 %v305, %v306
      %v308 = vsel %vm304, %v302, 0.0
      %v309 = vadd.f32 %v307, %v308
      %v310 = vsel %vm304, %v303, 0.0
      %v311 = vadd.f32 %v309, %v310
      %v312 = vrot.slane %v311, 4
      %v313 = vadd.f32 %v311, %v312
      %v314 = vrot.slane %v313, 2
      %v315 = vadd.f32 %v313, %v314
      %v316 = vrot.slane %v315, 1
      %v317 = vadd.f32 %v315, %v316
      %v318 = vld [vmem:[%s1] sm:$0xff]
      %v319 = vld [vmem:[%s1 + $0x8] sm:$0xff]
      %v320 = vld [vmem:[%s1 + $0x10] sm:$0xff]
      %v321 = vld [vmem:[%s1 + $0x18] sm:$0xff]
      %v322 = vld [vmem:[%s1 + $0x20] sm:$0xff]
      %v323 = vld [vmem:[%s1 + $0x28] sm:$0xff]
      %v324 = vld [vmem:[%s1 + $0x30] sm:$0xff]
      %v325 = vld [vmem:[%s1 + $0x38] sm:$0xff]
      %327 = vset.pattern.permute.xlu0 0
      %328 = vperm.xlu0 %327, %v284
      %v329 = vpop.permute.xlu0 %328
      %332 = vset.pattern.permute.xlu0 0
      %333 = vperm.xlu0 %332, %v285
      %v334 = vpop.permute.xlu0 %333
      %337 = vset.pattern.permute.xlu0 0
      %338 = vperm.xlu0 %337, %v286
      %v339 = vpop.permute.xlu0 %338
      %342 = vset.pattern.permute.xlu0 0
      %343 = vperm.xlu0 %342, %v287
      %v344 = vpop.permute.xlu0 %343
      %347 = vset.pattern.permute.xlu0 0
      %348 = vperm.xlu0 %347, %v288
      %v349 = vpop.permute.xlu0 %348
      %352 = vset.pattern.permute.xlu0 0
      %353 = vperm.xlu0 %352, %v289
      %v354 = vpop.permute.xlu0 %353
      %357 = vset.pattern.permute.xlu0 0
      %358 = vperm.xlu0 %357, %v290
      %v359 = vpop.permute.xlu0 %358
      %362 = vset.pattern.permute.xlu0 0
      %363 = vperm.xlu0 %362, %v291
      %v364 = vpop.permute.xlu0 %363
      %v366 = vmul.f32 %v329, %v317
      %v367 = vmul.f32 %v334, %v317
      %v368 = vmul.f32 %v339, %v317
      %v369 = vmul.f32 %v344, %v317
      %v370 = vmul.f32 %v349, %v317
      %v371 = vmul.f32 %v354, %v317
      %v372 = vmul.f32 %v359, %v317
      %v373 = vmul.f32 %v364, %v317
      %vm374 = vcmask 261120
      %v376 = vsel %vm374, %v318, 0
      %v379 = vsel %vm374, %v319, 0
      %v382 = vsel %vm374, %v320, 0
      %v385 = vsel %vm374, %v321, 0
      %v388 = vsel %vm374, %v322, 0
      %v391 = vsel %vm374, %v323, 0
      %v394 = vsel %vm374, %v324, 0
      %v397 = vsel %vm374, %v325, 0
      %399 = vmatprep.subr.mxu0 0.0
      %400 = vmatpush1.msra.mxu0 %v280
      %401 = vmatprep.subr.mxu0 0.0
      %402 = vmatpush1.msra.mxu0 %v281
      %403 = vmatprep.subr.mxu0 0.0
      %404 = vmatpush1.msra.mxu0 %v282
      %405 = vmatprep.subr.mxu0 0.0
      %406 = vmatpush1.msra.mxu0 %v283
      %407 = vmatprep.subr.mxu0 0.0
      %408 = vmatpush1.msra.mxu0 0.0
      %409 = vmatprep.subr.mxu0 0.0
      %410 = vmatpush1.msra.mxu0 0.0
      %411 = vmatprep.subr.mxu0 0.0
      %412 = vmatpush1.msra.mxu0 0.0
      %413 = vmatprep.subr.mxu0 0.0
      %414 = vmatpush1.msra.mxu0 0.0
      %415 = vmatprep.subr.mxu0 0.0
      %416 = vmatpush1.msra.mxu0 0.0
      %417 = vmatprep.subr.mxu0 0.0
      %418 = vmatpush1.msra.mxu0 0.0
      %419 = vmatprep.subr.mxu0 0.0
      %420 = vmatpush1.msra.mxu0 0.0
      %421 = vmatprep.subr.mxu0 0.0
      %422 = vmatpush1.msra.mxu0 0.0
      %423 = vmatprep.subr.mxu0 0.0
      %424 = vmatpush1.msra.mxu0 0.0
      %425 = vmatprep.subr.mxu0 0.0
      %426 = vmatpush1.msra.mxu0 0.0
      %427 = vmatprep.subr.mxu0 0.0
      %428 = vmatpush1.msra.mxu0 0.0
      %429 = vmatprep.subr.mxu0 0.0
      %430 = vmatpush1.msra.mxu0 0.0
      %431 = vmatprep.subr.mxu0 0.0
      %432 = vmatpush1.msra.mxu0 0.0
      %433 = vmatprep.subr.mxu0 0.0
      %434 = vmatpush1.msra.mxu0 0.0
      %435 = vmatprep.subr.mxu0 0.0
      %436 = vmatpush1.msra.mxu0 0.0
      %437 = vmatprep.subr.mxu0 0.0
      %438 = vmatpush1.msra.mxu0 0.0
      %439 = vmatprep.subr.mxu0 0.0
      %440 = vmatpush1.msra.mxu0 0.0
      %441 = vmatprep.subr.mxu0 0.0
      %442 = vmatpush1.msra.mxu0 0.0
      %443 = vmatprep.subr.mxu0 0.0
      %444 = vmatpush1.msra.mxu0 0.0
      %445 = vmatprep.subr.mxu0 0.0
      %446 = vmatpush1.msra.mxu0 0.0
      %447 = vmatprep.subr.mxu0 0.0
      %448 = vmatpush1.msra.mxu0 0.0
      %449 = vmatprep.subr.mxu0 0.0
      %450 = vmatpush1.msra.mxu0 0.0
      %451 = vmatprep.subr.mxu0 0.0
      %452 = vmatpush1.msra.mxu0 0.0
      %453 = vmatprep.subr.mxu0 0.0
      %454 = vmatpush1.msra.mxu0 0.0
      %455 = vmatprep.subr.mxu0 0.0
      %456 = vmatpush1.msra.mxu0 0.0
      %457 = vmatprep.subr.mxu0 0.0
      %458 = vmatpush1.msra.mxu0 0.0
      %459 = vmatprep.subr.mxu0 0.0
      %460 = vmatpush1.msra.mxu0 0.0
      %461 = vmatprep.subr.mxu0 0.0
      %462 = vmatpush1.msra.mxu0 0.0
      %463 = vmatprep.mubr.f32.mxu0 0.0
      %464 = vmatmul.mubr.f32.gmra.mrb[0].mxu0 %v376
      %v465 = vpop.f32.mrb[0].mxu0
      %v466 = vadd.f32 %v366, %v465
      %v467 = vpop.f32.mrb[0].mxu0
      %468 = vmatprep.mubr.f32.mxu0 0.0
      %469 = vmatmul.mubr.f32.gmra.mrb[0].mxu0 %v379
      %v470 = vpop.f32.mrb[0].mxu0
      %v471 = vadd.f32 %v367, %v470
      %v472 = vpop.f32.mrb[0].mxu0
      %473 = vmatprep.mubr.f32.mxu0 0.0
      %474 = vmatmul.mubr.f32.gmra.mrb[0].mxu0 %v382
      %v475 = vpop.f32.mrb[0].mxu0
      %v476 = vadd.f32 %v368, %v475
      %v477 = vpop.f32.mrb[0].mxu0
      %478 = vmatprep.mubr.f32.mxu0 0.0
      %479 = vmatmul.mubr.f32.gmra.mrb[0].mxu0 %v385
      %v480 = vpop.f32.mrb[0].mxu0
      %v481 = vadd.f32 %v369, %v480
      %v482 = vpop.f32.mrb[0].mxu0
      %483 = vmatprep.mubr.f32.mxu0 0.0
      %484 = vmatmul.mubr.f32.gmra.mrb[0].mxu0 %v388
      %v485 = vpop.f32.mrb[0].mxu0
      %v486 = vadd.f32 %v370, %v485
      %v487 = vpop.f32.mrb[0].mxu0
      %488 = vmatprep.mubr.f32.mxu0 0.0
      %489 = vmatmul.mubr.f32.gmra.mrb[0].mxu0 %v391
      %v490 = vpop.f32.mrb[0].mxu0
      %v491 = vadd.f32 %v371, %v490
      %v492 = vpop.f32.mrb[0].mxu0
      %493 = vmatprep.mubr.f32.mxu0 0.0
      %494 = vmatmul.mubr.f32.gmra.mrb[0].mxu0 %v394
      %v495 = vpop.f32.mrb[0].mxu0
      %v496 = vadd.f32 %v372, %v495
      %v497 = vpop.f32.mrb[0].mxu0
      %498 = vmatprep.mubr.f32.mxu0 0.0
      %499 = vmatmul.mubr.f32.gmra.mrb[0].mxu0 %v397
      %v500 = vpop.f32.mrb[0].mxu0
      %v501 = vadd.f32 %v373, %v500
      %v502 = vpop.f32.mrb[0].mxu0
      %503 = vdwg.mxu0
      %505 = vset.pattern.permute.xlu0 0
      %506 = vperm.xlu0 %505, %v292
      %v507 = vpop.permute.xlu0 %506
      %510 = vset.pattern.permute.xlu0 0
      %511 = vperm.xlu0 %510, %v293
      %v512 = vpop.permute.xlu0 %511
      %515 = vset.pattern.permute.xlu0 0
      %516 = vperm.xlu0 %515, %v294
      %v517 = vpop.permute.xlu0 %516
      %520 = vset.pattern.permute.xlu0 0
      %521 = vperm.xlu0 %520, %v295
      %v522 = vpop.permute.xlu0 %521
      %525 = vset.pattern.permute.xlu0 0
      %526 = vperm.xlu0 %525, %v296
      %v527 = vpop.permute.xlu0 %526
      %530 = vset.pattern.permute.xlu0 0
      %531 = vperm.xlu0 %530, %v297
      %v532 = vpop.permute.xlu0 %531
      %535 = vset.pattern.permute.xlu0 0
      %536 = vperm.xlu0 %535, %v298
      %v537 = vpop.permute.xlu0 %536
      %540 = vset.pattern.permute.xlu0 0
      %541 = vperm.xlu0 %540, %v299
      %v542 = vpop.permute.xlu0 %541
      %v544 = vadd.f32 %v466, %v507
      %v545 = vadd.f32 %v471, %v512
      %v546 = vadd.f32 %v476, %v517
      %v547 = vadd.f32 %v481, %v522
      %v548 = vadd.f32 %v486, %v527
      %v549 = vadd.f32 %v491, %v532
      %v550 = vadd.f32 %v496, %v537
      %v551 = vadd.f32 %v501, %v542
      %v552 = vsel %vm304, %v544, -inf
      %v553 = vsel %vm304, %v545, -inf
      %v554 = vsel %vm304, %v546, -inf
      %v555 = vsel %vm304, %v547, -inf
      %v556 = vsel %vm304, %v548, -inf
      %v557 = vmax.f32 %v552, %v556
      %v558 = vsel %vm304, %v549, -inf
      %v559 = vmax.f32 %v553, %v558
      %v560 = vsel %vm304, %v550, -inf
      %v561 = vmax.f32 %v554, %v560
      %v562 = vsel %vm304, %v551, -inf
      %v563 = vmax.f32 %v555, %v562
      %v564 = vmax.f32 %v557, %v559
      %v565 = vmax.f32 %v561, %v563
      %v566 = vmax.f32 %v564, %v565
      %v567 = vrot.slane %v566, 4
      %v568 = vmax.f32 %v566, %v567
      %v569 = vrot.slane %v568, 2
      %v570 = vmax.f32 %v568, %v569
      %v571 = vrot.slane %v570, 1
      %v572 = vmax.f32 %v570, %v571
      %v573 = vsub.f32 %v544, %v572
      %v574 = vsub.f32 %v545, %v572
      %v575 = vsub.f32 %v546, %v572
      %v576 = vsub.f32 %v547, %v572
      %v577 = vsub.f32 %v548, %v572
      %v578 = vsub.f32 %v549, %v572
      %v579 = vsub.f32 %v550, %v572
      %v580 = vsub.f32 %v551, %v572
      %v581 = vmul.f32 %v573, 1.442695
      %v582 = vpow.pop %v581
      %v583 = vmul.f32 %v574, 1.442695
      %v584 = vpow.pop %v583
      %v585 = vmul.f32 %v575, 1.442695
      %v586 = vpow.pop %v585
      %v587 = vmul.f32 %v576, 1.442695
      %v588 = vpow.pop %v587
      %v589 = vmul.f32 %v577, 1.442695
      %v590 = vpow.pop %v589
      %v591 = vmul.f32 %v578, 1.442695
      %v592 = vpow.pop %v591
      %v593 = vmul.f32 %v579, 1.442695
      %v594 = vpow.pop %v593
      %v595 = vmul.f32 %v580, 1.442695
      %v596 = vpow.pop %v595
      %v597 = vsel %vm304, %v582, 0.0
      %v598 = vsel %vm304, %v584, 0.0
      %v599 = vadd.f32 %v597, %v598
      %v600 = vsel %vm304, %v586, 0.0
      %v601 = vadd.f32 %v599, %v600
      %v602 = vsel %vm304, %v588, 0.0
      %v603 = vadd.f32 %v601, %v602
      %v604 = vsel %vm304, %v590, 0.0
      %v605 = vadd.f32 %v603, %v604
      %v606 = vsel %vm304, %v592, 0.0
      %v607 = vadd.f32 %v605, %v606
      %v608 = vsel %vm304, %v594, 0.0
      %v609 = vadd.f32 %v607, %v608
      %v610 = vsel %vm304, %v596, 0.0
      %v611 = vadd.f32 %v609, %v610
      %v612 = vrot.slane %v611, 4
      %v613 = vadd.f32 %v611, %v612
      %v614 = vrot.slane %v613, 2
      %v615 = vadd.f32 %v613, %v614
      %v616 = vrot.slane %v615, 1
      %v617 = vadd.f32 %v615, %v616
      %v618 = vrcp.pop %v617
      %v619 = vmul.f32 %v582, %v618
      %v620 = vmul.f32 %v584, %v618
      %v621 = vmul.f32 %v586, %v618
      %v622 = vmul.f32 %v588, %v618
      %v623 = vmul.f32 %v590, %v618
      %v624 = vmul.f32 %v592, %v618
      %v625 = vmul.f32 %v594, %v618
      %v626 = vmul.f32 %v596, %v618
      %627 = vst.msk [vmem:[#allocation3] sm:$0xff] %vm304, %v280
      %628 = vst.msk [vmem:[#allocation3 + $0x8] sm:$0xff] %vm304, %v281
      %629 = vst.msk [vmem:[#allocation3 + $0x10] sm:$0xff] %vm304, %v282
      %630 = vst.msk [vmem:[#allocation3 + $0x18] sm:$0xff] %vm304, %v283
      %vm631 = vcmask 516096
      %632 = vst.msk [vmem:[#allocation3 + $0x20] sm:$0x1] %vm631, 1.0
      %v633 = vld [vmem:[#allocation2] sm:$0xff]
      %v634 = vld [vmem:[#allocation2 + $0x8] sm:$0xff]
      %v635 = vld [vmem:[#allocation2 + $0x10] sm:$0xff]
      %v636 = vld [vmem:[#allocation2 + $0x18] sm:$0xff]
      %v637 = vld [vmem:[#allocation2 + $0x20] sm:$0xff]
      %v638 = vld [vmem:[#allocation2 + $0x28] sm:$0xff]
      %v639 = vld [vmem:[#allocation2 + $0x30] sm:$0xff]
      %v640 = vld [vmem:[#allocation2 + $0x38] sm:$0xff]
      %v641 = vld [vmem:[#allocation3] sm:$0xff]
      %v642 = vld [vmem:[#allocation3 + $0x8] sm:$0xff]
      %v643 = vld [vmem:[#allocation3 + $0x10] sm:$0xff]
      %v644 = vld [vmem:[#allocation3 + $0x18] sm:$0xff]
      %v645 = vld [vmem:[#allocation3 + $0x20] sm:$0x1]
      %v647 = vsel %vm304, %v619, 0
      %v650 = vsel %vm304, %v620, 0
      %v653 = vsel %vm304, %v621, 0
      %v656 = vsel %vm304, %v622, 0
      %v659 = vsel %vm304, %v623, 0
      %v662 = vsel %vm304, %v624, 0
      %v665 = vsel %vm304, %v625, 0
      %v668 = vsel %vm304, %v626, 0
      %v671 = vsel %vm304, %v641, 0
      %v674 = vsel %vm304, %v642, 0
      %v677 = vsel %vm304, %v643, 0
      %v680 = vsel %vm304, %v644, 0
      %v683 = vsel %vm304, %v645, 0
      %685 = vmatprep.subr.mxu0 0.0
      %686 = vmatpush1.xpose.msra.mxu0 %v671
      %687 = vmatprep.subr.mxu0 0.0
      %688 = vmatpush1.xpose.msra.mxu0 %v674
      %689 = vmatprep.subr.mxu0 0.0
      %690 = vmatpush1.xpose.msra.mxu0 %v677
      %691 = vmatprep.subr.mxu0 0.0
      %692 = vmatpush1.xpose.msra.mxu0 %v680
      %693 = vmatprep.subr.mxu0 0.0
      %694 = vmatpush1.xpose.msra.mxu0 %v683
      %695 = vmatprep.subr.mxu0 0.0
      %696 = vmatpush1.xpose.msra.mxu0 0.0
      %697 = vmatprep.subr.mxu0 0.0
      %698 = vmatpush1.xpose.msra.mxu0 0.0
      %699 = vmatprep.subr.mxu0 0.0
      %700 = vmatpush1.xpose.msra.mxu0 0.0
      %701 = vmatprep.subr.mxu0 0.0
      %702 = vmatpush1.xpose.msra.mxu0 0.0
      %703 = vmatprep.subr.mxu0 0.0
      %704 = vmatpush1.xpose.msra.mxu0 0.0
      %705 = vmatprep.subr.mxu0 0.0
      %706 = vmatpush1.xpose.msra.mxu0 0.0
      %707 = vmatprep.subr.mxu0 0.0
      %708 = vmatpush1.xpose.msra.mxu0 0.0
      %709 = vmatprep.subr.mxu0 0.0
      %710 = vmatpush1.xpose.msra.mxu0 0.0
      %711 = vmatprep.subr.mxu0 0.0
      %712 = vmatpush1.xpose.msra.mxu0 0.0
      %713 = vmatprep.subr.mxu0 0.0
      %714 = vmatpush1.xpose.msra.mxu0 0.0
      %715 = vmatprep.subr.mxu0 0.0
      %716 = vmatpush1.xpose.msra.mxu0 0.0
      %717 = vmatprep.subr.mxu0 0.0
      %718 = vmatpush1.xpose.msra.mxu0 0.0
      %719 = vmatprep.subr.mxu0 0.0
      %720 = vmatpush1.xpose.msra.mxu0 0.0
      %721 = vmatprep.subr.mxu0 0.0
      %722 = vmatpush1.xpose.msra.mxu0 0.0
      %723 = vmatprep.subr.mxu0 0.0
      %724 = vmatpush1.xpose.msra.mxu0 0.0
      %725 = vmatprep.subr.mxu0 0.0
      %726 = vmatpush1.xpose.msra.mxu0 0.0
      %727 = vmatprep.subr.mxu0 0.0
      %728 = vmatpush1.xpose.msra.mxu0 0.0
      %729 = vmatprep.subr.mxu0 0.0
      %730 = vmatpush1.xpose.msra.mxu0 0.0
      %731 = vmatprep.subr.mxu0 0.0
      %732 = vmatpush1.xpose.msra.mxu0 0.0
      %733 = vmatprep.subr.mxu0 0.0
      %734 = vmatpush1.xpose.msra.mxu0 0.0
      %735 = vmatprep.subr.mxu0 0.0
      %736 = vmatpush1.xpose.msra.mxu0 0.0
      %737 = vmatprep.subr.mxu0 0.0
      %738 = vmatpush1.xpose.msra.mxu0 0.0
      %739 = vmatprep.subr.mxu0 0.0
      %740 = vmatpush1.xpose.msra.mxu0 0.0
      %741 = vmatprep.subr.mxu0 0.0
      %742 = vmatpush1.xpose.msra.mxu0 0.0
      %743 = vmatprep.subr.mxu0 0.0
      %744 = vmatpush1.xpose.msra.mxu0 0.0
      %745 = vmatprep.subr.mxu0 0.0
      %746 = vmatpush1.xpose.msra.mxu0 0.0
      %747 = vmatprep.subr.mxu0 0.0
      %748 = vmatpush1.xpose.msra.mxu0 0.0
      %749 = vmatprep.mubr.f32.mxu0 0.0
      %750 = vmatmul.mubr.f32.gmra.mrb[0].mxu0 %v647
      %v751 = vpop.f32.mrb[0].mxu0
      %v752 = vadd.f32 0.0, %v751
      %v753 = vpop.f32.mrb[0].mxu0
      %754 = vmatprep.mubr.f32.mxu0 0.0
      %755 = vmatmul.mubr.f32.gmra.mrb[0].mxu0 %v650
      %v756 = vpop.f32.mrb[0].mxu0
      %v757 = vadd.f32 0.0, %v756
      %v758 = vpop.f32.mrb[0].mxu0
      %759 = vmatprep.mubr.f32.mxu0 0.0
      %760 = vmatmul.mubr.f32.gmra.mrb[0].mxu0 %v653
      %v761 = vpop.f32.mrb[0].mxu0
      %v762 = vadd.f32 0.0, %v761
      %v763 = vpop.f32.mrb[0].mxu0
      %764 = vmatprep.mubr.f32.mxu0 0.0
      %765 = vmatmul.mubr.f32.gmra.mrb[0].mxu0 %v656
      %v766 = vpop.f32.mrb[0].mxu0
      %v767 = vadd.f32 0.0, %v766
      %v768 = vpop.f32.mrb[0].mxu0
      %769 = vmatprep.mubr.f32.mxu0 0.0
      %770 = vmatmul.mubr.f32.gmra.mrb[0].mxu0 %v659
      %v771 = vpop.f32.mrb[0].mxu0
      %v772 = vadd.f32 0.0, %v771
      %v773 = vpop.f32.mrb[0].mxu0
      %774 = vmatprep.mubr.f32.mxu0 0.0
      %775 = vmatmul.mubr.f32.gmra.mrb[0].mxu0 %v662
      %v776 = vpop.f32.mrb[0].mxu0
      %v777 = vadd.f32 0.0, %v776
      %v778 = vpop.f32.mrb[0].mxu0
      %779 = vmatprep.mubr.f32.mxu0 0.0
      %780 = vmatmul.mubr.f32.gmra.mrb[0].mxu0 %v665
      %v781 = vpop.f32.mrb[0].mxu0
      %v782 = vadd.f32 0.0, %v781
      %v783 = vpop.f32.mrb[0].mxu0
      %784 = vmatprep.mubr.f32.mxu0 0.0
      %785 = vmatmul.mubr.f32.gmra.mrb[0].mxu0 %v668
      %v786 = vpop.f32.mrb[0].mxu0
      %v787 = vadd.f32 0.0, %v786
      %v788 = vpop.f32.mrb[0].mxu0
      %789 = vdwg.mxu0
      %v790 = vadd.f32 %v633, %v752
      %v791 = vadd.f32 %v634, %v757
      %v792 = vadd.f32 %v635, %v762
      %v793 = vadd.f32 %v636, %v767
      %v794 = vadd.f32 %v637, %v772
      %v795 = vadd.f32 %v638, %v777
      %v796 = vadd.f32 %v639, %v782
      %v797 = vadd.f32 %v640, %v787
      %vm798 = vcmask 269312
      %799 = vst.msk [vmem:[#allocation2] sm:$0xff] %vm798, %v790
      %800 = vst.msk [vmem:[#allocation2 + $0x8] sm:$0xff] %vm798, %v791
      %801 = vst.msk [vmem:[#allocation2 + $0x10] sm:$0xff] %vm798, %v792
      %802 = vst.msk [vmem:[#allocation2 + $0x18] sm:$0xff] %vm798, %v793
      %803 = vst.msk [vmem:[#allocation2 + $0x20] sm:$0xff] %vm798, %v794
      %804 = vst.msk [vmem:[#allocation2 + $0x28] sm:$0xff] %vm798, %v795
      %805 = vst.msk [vmem:[#allocation2 + $0x30] sm:$0xff] %vm798, %v796
      %806 = vst.msk [vmem:[#allocation2 + $0x38] sm:$0xff] %vm798, %v797
      // Predicated region
      $region45: #{tpu_custom_call.1} parent=39 // pred_check
        %p807 = pneg %p267
      $region46: #{tpu_custom_call.1} parent=39 // pred_check_branch
        %809 = sbr.rel (%p807) target = $region48
      $region47: #{tpu_custom_call.1} parent=39 // pred_region
        %v810 = vld [vmem:[#allocation2] sm:$0xff]
        %v811 = vld [vmem:[#allocation2 + $0x8] sm:$0xff]
        %v812 = vld [vmem:[#allocation2 + $0x10] sm:$0xff]
        %v813 = vld [vmem:[#allocation2 + $0x18] sm:$0xff]
        %v814 = vld [vmem:[#allocation2 + $0x20] sm:$0xff]
        %v815 = vld [vmem:[#allocation2 + $0x28] sm:$0xff]
        %v816 = vld [vmem:[#allocation2 + $0x30] sm:$0xff]
        %v817 = vld [vmem:[#allocation2 + $0x38] sm:$0xff]
        %v818 = vld [vmem:[%s2] sm:$0xff]
        %v819 = vld [vmem:[%s2 + $0x8] sm:$0xff]
        %v820 = vld [vmem:[%s2 + $0x10] sm:$0xff]
        %v821 = vld [vmem:[%s2 + $0x18] sm:$0xff]
        %v822 = vld [vmem:[%s2 + $0x20] sm:$0xff]
        %v823 = vld [vmem:[%s2 + $0x28] sm:$0xff]
        %v824 = vld [vmem:[%s2 + $0x30] sm:$0xff]
        %v825 = vld [vmem:[%s2 + $0x38] sm:$0xff]
        %827 = vset.pattern.permute.xlu0 32
        %828 = vperm.xlu0 %827, %v810
        %v829 = vpop.permute.xlu0 %828
        %832 = vset.pattern.permute.xlu0 32
        %833 = vperm.xlu0 %832, %v811
        %v834 = vpop.permute.xlu0 %833
        %837 = vset.pattern.permute.xlu0 32
        %838 = vperm.xlu0 %837, %v812
        %v839 = vpop.permute.xlu0 %838
        %842 = vset.pattern.permute.xlu0 32
        %843 = vperm.xlu0 %842, %v813
        %v844 = vpop.permute.xlu0 %843
        %847 = vset.pattern.permute.xlu0 32
        %848 = vperm.xlu0 %847, %v814
        %v849 = vpop.permute.xlu0 %848
        %852 = vset.pattern.permute.xlu0 32
        %853 = vperm.xlu0 %852, %v815
        %v854 = vpop.permute.xlu0 %853
        %857 = vset.pattern.permute.xlu0 32
        %858 = vperm.xlu0 %857, %v816
        %v859 = vpop.permute.xlu0 %858
        %862 = vset.pattern.permute.xlu0 32
        %863 = vperm.xlu0 %862, %v817
        %v864 = vpop.permute.xlu0 %863
        %v866 = vmul.f32 %v829, %v818
        %v867 = vmul.f32 %v834, %v819
        %v868 = vmul.f32 %v839, %v820
        %v869 = vmul.f32 %v844, %v821
        %v870 = vmul.f32 %v849, %v822
        %v871 = vmul.f32 %v854, %v823
        %v872 = vmul.f32 %v859, %v824
        %v873 = vmul.f32 %v864, %v825
        %v874 = vsub.f32 %v810, %v866
        %v875 = vsub.f32 %v811, %v867
        %v876 = vsub.f32 %v812, %v868
        %v877 = vsub.f32 %v813, %v869
        %v878 = vsub.f32 %v814, %v870
        %v879 = vsub.f32 %v815, %v871
        %v880 = vsub.f32 %v816, %v872
        %v881 = vsub.f32 %v817, %v873
        %882 = vst.msk [vmem:[%s265] sm:$0xff] %vm374, %v874
        %883 = vst.msk [vmem:[%s265 + $0x8] sm:$0xff] %vm374, %v875
        %884 = vst.msk [vmem:[%s265 + $0x10] sm:$0xff] %vm374, %v876
        %885 = vst.msk [vmem:[%s265 + $0x18] sm:$0xff] %vm374, %v877
        %886 = vst.msk [vmem:[%s265 + $0x20] sm:$0xff] %vm374, %v878
        %887 = vst.msk [vmem:[%s265 + $0x28] sm:$0xff] %vm374, %v879
        %888 = vst.msk [vmem:[%s265 + $0x30] sm:$0xff] %vm374, %v880
        %889 = vst.msk [vmem:[%s265 + $0x38] sm:$0xff] %vm374, %v881
      $region48: #{tpu_custom_call.1} parent=39 // pred_fallthru
        _
      %s890 = sadd.s32 %s21, %s22
      %p891 = scmp.lt.s32.totalorder %s890, 1
      %s892 = scalar_select %p891, %s890, 1
      %s893 = smul.addr %s892, 8
      %s894 = smul.addr %s893, 8
      %s895 = scalar_lea.vmem %s5, %s894
      // Predicated region
      $region49: #{tpu_custom_call.1} parent=39 // pred_check
        %p896 = pneg %p169
      $region50: #{tpu_custom_call.1} parent=39 // pred_check_branch
        %898 = sbr.rel (%p896) target = $region52
      $region51: #{tpu_custom_call.1} parent=39 // pred_region
        %s899 = sadd.s32 %s21, %s22
      $region52: #{tpu_custom_call.1} parent=39 // pred_fallthru
        _
    $region40: #{tpu_custom_call.1} parent=5 // pred_fallthru
      _
    %p900 = scmp.le.s32.totalorder 2, %s11
    // Predicated region
    $region53: #{tpu_custom_call.1} parent=5 // pred_check
      %p901 = pneg %p900
    $region54: #{tpu_custom_call.1} parent=5 // pred_check_branch
      %903 = sbr.rel (%p901) target = $region56
    $region55: #{tpu_custom_call.1} parent=5 // pred_region
      %s904 = ssub.s32 %s11, 2
      // Predicated region
      $region57: #{tpu_custom_call.1} parent=55 // pred_check
        %p905 = pneg %p175
      $region58: #{tpu_custom_call.1} parent=55 // pred_check_branch
        %907 = sbr.rel (%p905) target = $region60
      $region59: #{tpu_custom_call.1} parent=55 // pred_region
        %s908 = sadd.s32 %s24, %s25
        %p909 = scmp.lt.s32.totalorder %s908, 1
        %s910 = scalar_select %p909, %s908, 1
        %s911 = smul.addr %s910, 8
        %s912 = smul.addr %s911, 8
        %s913 = scalar_lea.vmem %s5, %s912
      $region60: #{tpu_custom_call.1} parent=55 // pred_fallthru
        _
    $region56: #{tpu_custom_call.1} parent=5 // pred_fallthru
      _
  $region6: #{tpu_custom_call.1} parent=0 // loop_footer
    %s15 = sadd.s32 1, %s11
  $region7: #{tpu_custom_call.1} parent=0 // loop_footer_branch
    %10 = sbr.rel target = $region3
  $region8: #{tpu_custom_call.1} parent=0 // loop_exit
    _

</llo_original>
